<compile_context>
chip_gen: v7x
topology: tpu7x:2x2x1
jax: 0.10.0
libtpu: 0.0.40
codegen_flags: <defaults>
</compile_context>

<pallas_src>
import jax
import jax.numpy as jnp
from jax.experimental import pallas as pl
from jax.experimental.pallas import tpu as pltpu

_LANE = 128      # output last dim kept a multiple of this -> unmasked stores
_SUBLANE = 8


def _round_up(x, m):
    return (x + m - 1) // m * m


def _patch_embed_kernel(x_ref, w_ref, b_ref, o_ref):
    # x_ref: (tm, K) patch tile, w_ref: (K, Ep), b_ref: (1, Ep) f32.
    # MXU matmul with f32 accumulation; bias add in f32; cast on store.
    acc = jnp.dot(x_ref[...], w_ref[...], preferred_element_type=jnp.float32)
    o_ref[...] = (acc + b_ref[...]).astype(o_ref.dtype)


def patch_embed_forward(x, weight, bias, patch_size, *, use_bf16=True,
                        tm=1024, out_dtype=None):
    """DeiT PatchEmbed forward.

    x:      (B, C, H, W)  NCHW image batch.
    weight: (E, C, P, P)  Conv2d weight.
    bias:   (E,)          Conv2d bias.
    use_bf16: bf16 MXU inputs (fast path; mandatory on v5e).  use_bf16=False
              is the exact-f32 escape hatch for accuracy-sensitive callers.
    out_dtype: override output dtype (e.g. jnp.bfloat16 to halve the output
               HBM stream); default keeps x.dtype, matching the nn.Module.
    Returns (B, num_patches, E), identical to
    nn.Conv2d(C, E, kernel_size=P, stride=P)(x).flatten(2).transpose(1, 2).
    """
    B, C, H, W = x.shape
    E = weight.shape[0]
    P = patch_size
    gh, gw = H // P, W // P
    num_patches = gh * gw
    M = B * num_patches
    K = C * P * P
    out_dtype = jnp.dtype(out_dtype) if out_dtype is not None else x.dtype
    in_dtype = jnp.bfloat16 if use_bf16 else x.dtype

    # ---- im2col glue: single fused XLA copy pass ---------------------------
    # (B,C,gh,P,gw,P) -> (B,gh,gw,C,P,P) -> (M,K); channel-major K matches the
    # Conv2d weight layout (E,C,P,P).  The .astype is in the same expression
    # so XLA fuses the convert into the transpose copy (one pass, bf16 write)
    # instead of an extra full-array cast pass.
    # TODO(synk): fold this gather into the kernel's input DMA (BlockSpec over
    # the free 6-D view + in-kernel permute, or allow_input_fusion) to remove
    # the remaining extra HBM pass on mem-bound v6e/v7x; kept as XLA glue here
    # because the in-kernel lane relayout of (..., gw, P) tiles with small P
    # is not robustly supported by Mosaic.
    patches = x.reshape(B, C, gh, P, gw, P)
    patches = (patches.transpose(0, 2, 4, 1, 3, 5)
               .reshape(M, K).astype(in_dtype))
    w2d = weight.reshape(E, K).T.astype(in_dtype)          # (K, E)
    b2d = bias.reshape(1, E).astype(jnp.float32)           # bias add stays f32

    # ---- pad only the tiny operands (E -> lane multiple); never pad M ------
    Ep = _round_up(E, _LANE)                               # lane-dense stores
    if Ep != E:
        w2d = jnp.pad(w2d, ((0, 0), (0, Ep - E)))
        b2d = jnp.pad(b2d, ((0, 0), (0, Ep - E)))

    # ---- M tiling ----------------------------------------------------------
    # Big tiles amortise per-step pipeline overhead; ragged last block is
    # masked by Pallas, so no pad copy of the (M, K) array is needed.
    tm = max(_SUBLANE, _round_up(int(tm), _SUBLANE))
    tm = min(tm, _round_up(M, _SUBLANE))
    grid_m = pl.cdiv(M, tm)

    # ---- VMEM budget: double-buffered tiles + ~50% headroom ----------------
    # 64 MiB cap = safe per-TC ceiling on v7x; these tiles stay far below it,
    # and v5e/v6e (128 MiB physical) have even more room.
    in_bytes = jnp.dtype(in_dtype).itemsize
    out_bytes = jnp.dtype(out_dtype).itemsize
    working_set = (2 * tm * K * in_bytes          # patches tile, x2 buffers
                   + 2 * K * Ep * in_bytes        # weight (<=2 buffers)
                   + 2 * Ep * 4                   # bias
                   + 2 * tm * Ep * out_bytes)     # output tile, x2 buffers
    vmem_limit = int(min(64 * 2**20, max(8 * 2**20, int(1.5 * working_set))))

    cost = pl.CostEstimate(
        flops=2 * M * K * Ep,
        transcendentals=0,
        bytes_accessed=(M * K * in_bytes + K * Ep * in_bytes + Ep * 4
                        + M * Ep * out_bytes),
    )

    def _run(single_buffer_consts):
        # Weight/bias have constant index maps -> one VMEM buffer is enough;
        # saves per-TC VMEM headroom when tm is pushed up (v7x: 64 MiB/TC).
        const_kwargs = (dict(pipeline_mode=pl.Buffered(1))
                        if single_buffer_consts else {})
        return pl.pallas_call(
            _patch_embed_kernel,
            out_shape=jax.ShapeDtypeStruct((M, Ep), out_dtype),
            grid=(grid_m,),
            in_specs=[
                pl.BlockSpec((tm, K), lambda i: (i, 0)),   # patch rows: tiled
                pl.BlockSpec((K, Ep), lambda i: (0, 0), **const_kwargs),
                pl.BlockSpec((1, Ep), lambda i: (0, 0), **const_kwargs),
            ],
            out_specs=pl.BlockSpec((tm, Ep), lambda i: (i, 0)),
            compiler_params=pltpu.CompilerParams(
                dimension_semantics=("parallel",),   # both TCs on v7x
                vmem_limit_bytes=vmem_limit,
            ),
            cost_estimate=cost,
        )(patches, w2d, b2d)

    try:
        out = _run(single_buffer_consts=True)
    except Exception:
        # pipeline_mode / pl.Buffered not available in this jax build ->
        # fall back to default double-buffering (same results).
        out = _run(single_buffer_consts=False)

    if Ep != E:
        out = out[:, :E]
    return out.reshape(B, num_patches, E)


def _reference(x, weight, bias, P):
    E = weight.shape[0]
    ref = jax.lax.conv_general_dilated(
        x, weight, window_strides=(P, P), padding="VALID",
        dimension_numbers=("NCHW", "OIHW", "NCHW"),
    ) + bias.reshape(1, E, 1, 1)
    B = x.shape[0]
    return ref.reshape(B, E, -1).transpose(0, 2, 1)


if __name__ == "__main__":
    key = jax.random.PRNGKey(0)

    # Case 1: toy shapes consistent with the module (img=16, patch=4,
    # in_chans=4, embed_dim=32, batch=2).  f32 path, single grid step.
    B, C, H, W, P, E = 2, 4, 16, 16, 4, 32
    k1, k2, k3, key = jax.random.split(key, 4)
    x = jax.random.normal(k1, (B, C, H, W), dtype=jnp.float32)
    weight = jax.random.normal(k2, (E, C, P, P), dtype=jnp.float32) * 0.02
    bias = jax.random.normal(k3, (E,), dtype=jnp.float32) * 0.02

    out = jax.block_until_ready(
        patch_embed_forward(x, weight, bias, P, use_bf16=False))
    assert out.shape == (B, (H // P) * (W // P), E), out.shape
    ref = _reference(x, weight, bias, P)
    assert jnp.allclose(out, ref, atol=1e-2, rtol=1e-2), (
        float(jnp.max(jnp.abs(out - ref))))

    # Case 2: bf16 path with a ragged M grid (M=256, tm=96 -> 3 steps, last
    # block partial) and padded embed dim (48 -> 128): exercises the masked
    # partial store, multi-step pipelining, and the lane-dense E padding.
    B2, C2, H2, W2, P2, E2 = 4, 3, 32, 32, 4, 48
    k1, k2, k3, key = jax.random.split(key, 4)
    x2 = jax.random.normal(k1, (B2, C2, H2, W2), dtype=jnp.float32)
    w2 = jax.random.normal(k2, (E2, C2, P2, P2), dtype=jnp.float32) * 0.02
    b2 = jax.random.normal(k3, (E2,), dtype=jnp.float32) * 0.02

    out2 = jax.block_until_ready(patch_embed_forward(x2, w2, b2, P2, tm=96))
    assert out2.shape == (B2, (H2 // P2) * (W2 // P2), E2), out2.shape
    ref2 = _reference(x2, w2, b2, P2)
    assert jnp.allclose(out2, ref2, atol=2e-2, rtol=2e-2), (
        float(jnp.max(jnp.abs(out2 - ref2))))

    print("KERNEL_OK")
</pallas_src>

<mosaic_0001>
module attributes {stable_mosaic.version = 11 : i64} {
  func.func @_patch_embed_kernel(%arg0: i32, %arg1: memref<32x64xf32, #tpu.memory_space<vmem>>, %arg2: memref<64x128xf32, #tpu.memory_space<vmem>>, %arg3: memref<1x128xf32, #tpu.memory_space<vmem>>, %arg4: memref<32x128xf32, #tpu.memory_space<vmem>>) attributes {dimension_semantics = [#tpu.dimension_semantics<parallel>], iteration_bounds = array<i64: 1>, scalar_prefetch = 0 : i64, scratch_operands = 0 : i64, tpu.core_type = #tpu.core_type<tc>, window_params = [{transform_indices = @transform_0, window_bounds = array<i64: 32, 64>}, {pipeline_mode = #tpu.pipeline_mode<synchronous>, transform_indices = @transform_1, window_bounds = array<i64: 64, 128>}, {pipeline_mode = #tpu.pipeline_mode<synchronous>, transform_indices = @transform_2, window_bounds = array<i64: 1, 128>}, {transform_indices = @transform_3, window_bounds = array<i64: 32, 128>}]} {
    %c0 = arith.constant 0 : index
    %c0_0 = arith.constant 0 : index
    %0 = vector.load %arg1[%c0, %c0_0] : memref<32x64xf32, #tpu.memory_space<vmem>>, vector<32x64xf32>
    %c0_1 = arith.constant 0 : index
    %c0_2 = arith.constant 0 : index
    %1 = vector.load %arg2[%c0_1, %c0_2] : memref<64x128xf32, #tpu.memory_space<vmem>>, vector<64x128xf32>
    %cst = arith.constant dense<0.000000e+00> : vector<32x128xf32>
    %2 = tpu.matmul %0, %1, %cst {dimension_numbers = #tpu.dot_dimension_numbers<[1], [0], [0], [1], [0, 0, 1, 1], [], []>} : vector<32x64xf32>, vector<64x128xf32>, vector<32x128xf32> -> vector<32x128xf32>
    %c0_3 = arith.constant 0 : index
    %c0_4 = arith.constant 0 : index
    %3 = vector.load %arg3[%c0_3, %c0_4] : memref<1x128xf32, #tpu.memory_space<vmem>>, vector<1x128xf32>
    %4 = vector.broadcast %3 : vector<1x128xf32> to vector<32x128xf32>
    %5 = arith.addf %2, %4 : vector<32x128xf32>
    %c0_5 = arith.constant 0 : index
    %c0_6 = arith.constant 0 : index
    %6 = vector.load %arg4[%c0_5, %c0_6] : memref<32x128xf32, #tpu.memory_space<vmem>>, vector<32x128xf32>
    tpu.vector_store %arg4[%c0_5, %c0_6], %5 {strides = array<i32>} : memref<32x128xf32, #tpu.memory_space<vmem>>, vector<32x128xf32>,
    return
  }
  func.func @transform_0(%arg0: i32) -> (i32, i32) {
    %c0_i32 = arith.constant 0 : i32
    %c0_i32_0 = arith.constant 0 : i32
    return %arg0, %c0_i32 : i32, i32
  }
  func.func @transform_1(%arg0: i32) -> (i32, i32) {
    %c0_i32 = arith.constant 0 : i32
    %c0_i32_0 = arith.constant 0 : i32
    %c0_i32_1 = arith.constant 0 : i32
    return %c0_i32, %c0_i32_0 : i32, i32
  }
  func.func @transform_2(%arg0: i32) -> (i32, i32) {
    %c0_i32 = arith.constant 0 : i32
    %c0_i32_0 = arith.constant 0 : i32
    %c0_i32_1 = arith.constant 0 : i32
    return %c0_i32, %c0_i32_0 : i32, i32
  }
  func.func @transform_3(%arg0: i32) -> (i32, i32) {
    %c0_i32 = arith.constant 0 : i32
    %c0_i32_0 = arith.constant 0 : i32
    return %arg0, %c0_i32 : i32, i32
  }
}

module attributes {stable_mosaic.version = 11 : i64} {
  func.func @_patch_embed_kernel(%arg0: i32, %arg1: memref<32x64xf32, #tpu.memory_space<vmem>>, %arg2: memref<64x128xf32, #tpu.memory_space<vmem>>, %arg3: memref<1x128xf32, #tpu.memory_space<vmem>>, %arg4: memref<32x128xf32, #tpu.memory_space<vmem>>) attributes {dimension_semantics = [#tpu.dimension_semantics<parallel>], iteration_bounds = array<i64: 1>, scalar_prefetch = 0 : i64, scratch_operands = 0 : i64, tpu.core_type = #tpu.core_type<tc>, window_params = [{transform_indices = @transform_0, window_bounds = array<i64: 32, 64>}, {pipeline_mode = #tpu.pipeline_mode<synchronous>, transform_indices = @transform_1, window_bounds = array<i64: 64, 128>}, {pipeline_mode = #tpu.pipeline_mode<synchronous>, transform_indices = @transform_2, window_bounds = array<i64: 1, 128>}, {transform_indices = @transform_3, window_bounds = array<i64: 32, 128>}]} {
    %c0 = arith.constant 0 : index
    %c0_0 = arith.constant 0 : index
    %0 = vector.load %arg1[%c0, %c0_0] : memref<32x64xf32, #tpu.memory_space<vmem>>, vector<32x64xf32>
    %c0_1 = arith.constant 0 : index
    %c0_2 = arith.constant 0 : index
    %1 = vector.load %arg2[%c0_1, %c0_2] : memref<64x128xf32, #tpu.memory_space<vmem>>, vector<64x128xf32>
    %cst = arith.constant dense<0.000000e+00> : vector<32x128xf32>
    %2 = tpu.matmul %0, %1, %cst {dimension_numbers = #tpu.dot_dimension_numbers<[1], [0], [0], [1], [0, 0, 1, 1], [], []>} : vector<32x64xf32>, vector<64x128xf32>, vector<32x128xf32> -> vector<32x128xf32>
    %c0_3 = arith.constant 0 : index
    %c0_4 = arith.constant 0 : index
    %3 = vector.load %arg3[%c0_3, %c0_4] : memref<1x128xf32, #tpu.memory_space<vmem>>, vector<1x128xf32>
    %4 = vector.broadcast %3 : vector<1x128xf32> to vector<32x128xf32>
    %5 = arith.addf %2, %4 : vector<32x128xf32>
    %c0_5 = arith.constant 0 : index
    %c0_6 = arith.constant 0 : index
    %6 = vector.load %arg4[%c0_5, %c0_6] : memref<32x128xf32, #tpu.memory_space<vmem>>, vector<32x128xf32>
    tpu.vector_store %arg4[%c0_5, %c0_6], %5 {strides = array<i32>} : memref<32x128xf32, #tpu.memory_space<vmem>>, vector<32x128xf32>,
    return
  }
  func.func @transform_0(%arg0: i32) -> (i32, i32) {
    %c0_i32 = arith.constant 0 : i32
    %c0_i32_0 = arith.constant 0 : i32
    return %arg0, %c0_i32 : i32, i32
  }
  func.func @transform_1(%arg0: i32) -> (i32, i32) {
    %c0_i32 = arith.constant 0 : i32
    %c0_i32_0 = arith.constant 0 : i32
    %c0_i32_1 = arith.constant 0 : i32
    return %c0_i32, %c0_i32_0 : i32, i32
  }
  func.func @transform_2(%arg0: i32) -> (i32, i32) {
    %c0_i32 = arith.constant 0 : i32
    %c0_i32_0 = arith.constant 0 : i32
    %c0_i32_1 = arith.constant 0 : i32
    return %c0_i32, %c0_i32_0 : i32, i32
  }
  func.func @transform_3(%arg0: i32) -> (i32, i32) {
    %c0_i32 = arith.constant 0 : i32
    %c0_i32_0 = arith.constant 0 : i32
    return %arg0, %c0_i32 : i32, i32
  }
}

</mosaic_0001>

<llo_original>
// kernel: tpu_custom_call.1
$region0: #{tpu_custom_call.1}
  #allocation0 [shape = 'u32[]', space=smem, size = 0x4, offset = 0x4, fixed_abs, tag = 'smem constant byte address 0x4 - core index']
  #allocation1 [shape = 'u32[144,128]{1,0:T(1,128)}', space=vmem, size = 0x12000, scoped, tag = 'internal scratch']
  %s0 = inlined_call_operand.hbm [shape: f32[32,64], index: 0, kind: input, shape index: {}]
  %s1 = inlined_call_operand.hbm [shape: f32[64,128], index: 1, kind: input, shape index: {}]
  %s2 = inlined_call_operand.vmem [shape: f32[1,128], index: 2, kind: input, shape index: {}]
  %s3 = inlined_call_operand.hbm [shape: f32[32,128], index: 3, kind: output, shape index: {}]
  %s4 = sld [smem:[#allocation0]]
  $region30: #{tpu_custom_call.1} parent=0
    _
  %s6 = ssub.s32 1, %s4
  %s7 = scalar_select 0, %s6, %s4
  $region1: #{tpu_custom_call.1} parent=0
    #allocation2 [shape = 'u8[16384]{0}', space=vmem, size = 0x4000, scoped, tag = 'input window, operand 0, single buffered']
    #allocation3 [shape = 's32[1]{0}', space=sflag, size = 0x4, scoped, tag = 'scoped memory for tpu_custom_call.1']
    #allocation4 [shape = 's32[1]{0}', space=sflag, size = 0x4, scoped, tag = 'scoped memory for tpu_custom_call.1']
    #allocation5 [shape = 'u8[32768]{0}', space=vmem, size = 0x8000, scoped, tag = 'input window, operand 1, single buffered']
    #allocation6 [shape = 's32[1]{0}', space=sflag, size = 0x4, scoped, tag = 'scoped memory for tpu_custom_call.1']
    #allocation7 [shape = 'u8[16384]{0}', space=vmem, size = 0x4000, scoped, tag = 'output window, operand 0, single buffered']
    %8 = vsyncpa [#allocation3], 0
    %9 = vsyncpa [#allocation6], 0
    %10 = vsyncpa [#allocation4], 0
    // Predicated region
    $region2: #{tpu_custom_call.1} parent=1 // pred_check
      _
    $region3: #{tpu_custom_call.1} parent=1 // pred_check_branch
      %12 = sbr.rel (0) target = $region5
    $region4: #{tpu_custom_call.1} parent=1 // pred_region
      %s14 = ssub.s32 512, 512
      %15 = vsyncadd [#allocation3], %s14
      %s16 = sshll.u32 [#allocation2], 4
      %s17 = int_to_ptr.vmem [resolvable:$true] %s16
      %22 = dma.hbm_to_vmem [thread:$0]  %s0, 512, %s17, [#allocation3], 128, 128, 8
    $region5: #{tpu_custom_call.1} parent=1 // pred_fallthru
      _
    // Predicated region
    $region6: #{tpu_custom_call.1} parent=1 // pred_check
      _
    $region7: #{tpu_custom_call.1} parent=1 // pred_check_branch
      %24 = sbr.rel (0) target = $region9
    $region8: #{tpu_custom_call.1} parent=1 // pred_region
      %s26 = ssub.s32 1024, 1024
      %27 = vsyncadd [#allocation6], %s26
      %s28 = sshll.u32 [#allocation5], 4
      %s29 = int_to_ptr.vmem [resolvable:$true] %s28
      %34 = dma.hbm_to_vmem [thread:$0]  %s1, 1024, %s29, [#allocation6], 128, 128, 8
    $region9: #{tpu_custom_call.1} parent=1 // pred_fallthru
      _
    // Predicated region
    $region10: #{tpu_custom_call.1} parent=1 // pred_check
      _
    $region11: #{tpu_custom_call.1} parent=1 // pred_check_branch
      %36 = sbr.rel (0) target = $region13
    $region12: #{tpu_custom_call.1} parent=1 // pred_region
      _
    $region13: #{tpu_custom_call.1} parent=1 // pred_fallthru
      _
    // Predicated region
    $region14: #{tpu_custom_call.1} parent=1 // pred_check
      _
    $region15: #{tpu_custom_call.1} parent=1 // pred_check_branch
      %38 = sbr.rel (0) target = $region17
    $region16: #{tpu_custom_call.1} parent=1 // pred_region
      %39 = dma.done [#allocation3], 512
    $region17: #{tpu_custom_call.1} parent=1 // pred_fallthru
      _
    // Predicated region
    $region18: #{tpu_custom_call.1} parent=1 // pred_check
      _
    $region19: #{tpu_custom_call.1} parent=1 // pred_check_branch
      %41 = sbr.rel (0) target = $region21
    $region20: #{tpu_custom_call.1} parent=1 // pred_region
      %42 = dma.done [#allocation6], 1024
    $region21: #{tpu_custom_call.1} parent=1 // pred_fallthru
      _
    %v43 = vld [vmem:[#allocation2] sm:$0xff]
    %v44 = vld [vmem:[#allocation2 + $0x8] sm:$0xff]
    %v45 = vld [vmem:[#allocation2 + $0x10] sm:$0xff]
    %v46 = vld [vmem:[#allocation2 + $0x18] sm:$0xff]
    %v47 = vld [vmem:[#allocation5] sm:$0xff]
    %v48 = vld [vmem:[#allocation5 + $0x8] sm:$0xff]
    %v49 = vld [vmem:[#allocation5 + $0x10] sm:$0xff]
    %v50 = vld [vmem:[#allocation5 + $0x18] sm:$0xff]
    %v51 = vld [vmem:[#allocation5 + $0x20] sm:$0xff]
    %v52 = vld [vmem:[#allocation5 + $0x28] sm:$0xff]
    %v53 = vld [vmem:[#allocation5 + $0x30] sm:$0xff]
    %v54 = vld [vmem:[#allocation5 + $0x38] sm:$0xff]
    %v55 = vld [vmem:[%s2] sm:$0x1]
    %v57 = vlaneseq
    %v58 = vshrl.u32 %v57, 7
    %v59 = vsub.s32 0, %v58
    %v60 = vrot.slane %v55, %v59
    %vm62 = vcmask 523264
    %v64 = vsel %vm62, %v43, 0
    %v67 = vsel %vm62, %v44, 0
    %v70 = vsel %vm62, %v45, 0
    %v73 = vsel %vm62, %v46, 0
    %75 = vmatprep.subr.mxu0 0.0
    %76 = vmatpush1.msra.mxu0 %v47
    %77 = vmatprep.subr.mxu0 0.0
    %78 = vmatpush1.msra.mxu0 %v48
    %79 = vmatprep.subr.mxu0 0.0
    %80 = vmatpush1.msra.mxu0 %v49
    %81 = vmatprep.subr.mxu0 0.0
    %82 = vmatpush1.msra.mxu0 %v50
    %83 = vmatprep.subr.mxu0 0.0
    %84 = vmatpush1.msra.mxu0 %v51
    %85 = vmatprep.subr.mxu0 0.0
    %86 = vmatpush1.msra.mxu0 %v52
    %87 = vmatprep.subr.mxu0 0.0
    %88 = vmatpush1.msra.mxu0 %v53
    %89 = vmatprep.subr.mxu0 0.0
    %90 = vmatpush1.msra.mxu0 %v54
    %91 = vmatprep.subr.mxu0 0.0
    %92 = vmatpush1.msra.mxu0 0.0
    %93 = vmatprep.subr.mxu0 0.0
    %94 = vmatpush1.msra.mxu0 0.0
    %95 = vmatprep.subr.mxu0 0.0
    %96 = vmatpush1.msra.mxu0 0.0
    %97 = vmatprep.subr.mxu0 0.0
    %98 = vmatpush1.msra.mxu0 0.0
    %99 = vmatprep.subr.mxu0 0.0
    %100 = vmatpush1.msra.mxu0 0.0
    %101 = vmatprep.subr.mxu0 0.0
    %102 = vmatpush1.msra.mxu0 0.0
    %103 = vmatprep.subr.mxu0 0.0
    %104 = vmatpush1.msra.mxu0 0.0
    %105 = vmatprep.subr.mxu0 0.0
    %106 = vmatpush1.msra.mxu0 0.0
    %107 = vmatprep.subr.mxu0 0.0
    %108 = vmatpush1.msra.mxu0 0.0
    %109 = vmatprep.subr.mxu0 0.0
    %110 = vmatpush1.msra.mxu0 0.0
    %111 = vmatprep.subr.mxu0 0.0
    %112 = vmatpush1.msra.mxu0 0.0
    %113 = vmatprep.subr.mxu0 0.0
    %114 = vmatpush1.msra.mxu0 0.0
    %115 = vmatprep.subr.mxu0 0.0
    %116 = vmatpush1.msra.mxu0 0.0
    %117 = vmatprep.subr.mxu0 0.0
    %118 = vmatpush1.msra.mxu0 0.0
    %119 = vmatprep.subr.mxu0 0.0
    %120 = vmatpush1.msra.mxu0 0.0
    %121 = vmatprep.subr.mxu0 0.0
    %122 = vmatpush1.msra.mxu0 0.0
    %123 = vmatprep.subr.mxu0 0.0
    %124 = vmatpush1.msra.mxu0 0.0
    %125 = vmatprep.subr.mxu0 0.0
    %126 = vmatpush1.msra.mxu0 0.0
    %127 = vmatprep.subr.mxu0 0.0
    %128 = vmatpush1.msra.mxu0 0.0
    %129 = vmatprep.subr.mxu0 0.0
    %130 = vmatpush1.msra.mxu0 0.0
    %131 = vmatprep.subr.mxu0 0.0
    %132 = vmatpush1.msra.mxu0 0.0
    %133 = vmatprep.subr.mxu0 0.0
    %134 = vmatpush1.msra.mxu0 0.0
    %135 = vmatprep.subr.mxu0 0.0
    %136 = vmatpush1.msra.mxu0 0.0
    %137 = vmatprep.subr.mxu0 0.0
    %138 = vmatpush1.msra.mxu0 0.0
    %139 = vmatprep.mubr.f32.mxu0 0.0
    %140 = vmatmul.mubr.f32.gmra.mrb[0].mxu0 %v64
    %v141 = vpop.f32.mrb[0].mxu0
    %v142 = vadd.f32 %v60, %v141
    %v143 = vpop.f32.mrb[0].mxu0
    %144 = vmatprep.mubr.f32.mxu0 0.0
    %145 = vmatmul.mubr.f32.gmra.mrb[0].mxu0 %v67
    %v146 = vpop.f32.mrb[0].mxu0
    %v147 = vadd.f32 %v60, %v146
    %v148 = vpop.f32.mrb[0].mxu0
    %149 = vmatprep.mubr.f32.mxu0 0.0
    %150 = vmatmul.mubr.f32.gmra.mrb[0].mxu0 %v70
    %v151 = vpop.f32.mrb[0].mxu0
    %v152 = vadd.f32 %v60, %v151
    %v153 = vpop.f32.mrb[0].mxu0
    %154 = vmatprep.mubr.f32.mxu0 0.0
    %155 = vmatmul.mubr.f32.gmra.mrb[0].mxu0 %v73
    %v156 = vpop.f32.mrb[0].mxu0
    %v157 = vadd.f32 %v60, %v156
    %v158 = vpop.f32.mrb[0].mxu0
    %159 = vdwg.mxu0
    %160 = vst [vmem:[#allocation7] sm:$0xff] %v142
    %161 = vst [vmem:[#allocation7 + $0x8] sm:$0xff] %v147
    %162 = vst [vmem:[#allocation7 + $0x10] sm:$0xff] %v152
    %163 = vst [vmem:[#allocation7 + $0x18] sm:$0xff] %v157
    // Predicated region
    $region22: #{tpu_custom_call.1} parent=1 // pred_check
      _
    $region23: #{tpu_custom_call.1} parent=1 // pred_check_branch
      %165 = sbr.rel (0) target = $region25
    $region24: #{tpu_custom_call.1} parent=1 // pred_region
      %s167 = ssub.s32 512, 512
      %168 = vsyncadd [#allocation4], %s167
      %s169 = sshll.u32 [#allocation7], 4
      %s170 = int_to_ptr.vmem [resolvable:$true] %s169
      %175 = dma.vmem_to_hbm [thread:$0]  %s170, 512, %s3, [#allocation4], 128, 128, 8
    $region25: #{tpu_custom_call.1} parent=1 // pred_fallthru
      _
    // Predicated region
    $region26: #{tpu_custom_call.1} parent=1 // pred_check
      _
    $region27: #{tpu_custom_call.1} parent=1 // pred_check_branch
      %177 = sbr.rel (0) target = $region29
    $region28: #{tpu_custom_call.1} parent=1 // pred_region
      %178 = dma.done [#allocation4], 512
    $region29: #{tpu_custom_call.1} parent=1 // pred_fallthru
      _
    %179 = vsyncpa [#allocation3], 1
    %180 = vsyncpa [#allocation6], 1
    %181 = vsyncpa [#allocation4], 1

// kernel: tpu_custom_call.1
$region0: #{tpu_custom_call.1}
  #allocation0 [shape = 'u32[]', space=smem, size = 0x4, offset = 0x4, fixed_abs, tag = 'smem constant byte address 0x4 - core index']
  #allocation1 [shape = 'u32[144,128]{1,0:T(1,128)}', space=vmem, size = 0x12000, scoped, tag = 'internal scratch']
  %s0 = inlined_call_operand.hbm [shape: f32[32,64], index: 0, kind: input, shape index: {}]
  %s1 = inlined_call_operand.hbm [shape: f32[64,128], index: 1, kind: input, shape index: {}]
  %s2 = inlined_call_operand.vmem [shape: f32[1,128], index: 2, kind: input, shape index: {}]
  %s3 = inlined_call_operand.hbm [shape: f32[32,128], index: 3, kind: output, shape index: {}]
  %s4 = sld [smem:[#allocation0]]
  $region30: #{tpu_custom_call.1} parent=0
    _
  %s6 = ssub.s32 1, %s4
  %s7 = scalar_select 0, %s6, %s4
  $region1: #{tpu_custom_call.1} parent=0
    #allocation2 [shape = 'u8[16384]{0}', space=vmem, size = 0x4000, scoped, tag = 'input window, operand 0, single buffered']
    #allocation3 [shape = 's32[1]{0}', space=sflag, size = 0x4, scoped, tag = 'scoped memory for tpu_custom_call.1']
    #allocation4 [shape = 's32[1]{0}', space=sflag, size = 0x4, scoped, tag = 'scoped memory for tpu_custom_call.1']
    #allocation5 [shape = 'u8[32768]{0}', space=vmem, size = 0x8000, scoped, tag = 'input window, operand 1, single buffered']
    #allocation6 [shape = 's32[1]{0}', space=sflag, size = 0x4, scoped, tag = 'scoped memory for tpu_custom_call.1']
    #allocation7 [shape = 'u8[16384]{0}', space=vmem, size = 0x4000, scoped, tag = 'output window, operand 0, single buffered']
    %8 = vsyncpa [#allocation3], 0
    %9 = vsyncpa [#allocation6], 0
    %10 = vsyncpa [#allocation4], 0
    // Predicated region
    $region2: #{tpu_custom_call.1} parent=1 // pred_check
      _
    $region3: #{tpu_custom_call.1} parent=1 // pred_check_branch
      %12 = sbr.rel (0) target = $region5
    $region4: #{tpu_custom_call.1} parent=1 // pred_region
      %s14 = ssub.s32 512, 512
      %15 = vsyncadd [#allocation3], %s14
      %s16 = sshll.u32 [#allocation2], 4
      %s17 = int_to_ptr.vmem [resolvable:$true] %s16
      %22 = dma.hbm_to_vmem [thread:$0]  %s0, 512, %s17, [#allocation3], 128, 128, 8
    $region5: #{tpu_custom_call.1} parent=1 // pred_fallthru
      _
    // Predicated region
    $region6: #{tpu_custom_call.1} parent=1 // pred_check
      _
    $region7: #{tpu_custom_call.1} parent=1 // pred_check_branch
      %24 = sbr.rel (0) target = $region9
    $region8: #{tpu_custom_call.1} parent=1 // pred_region
      %s26 = ssub.s32 1024, 1024
      %27 = vsyncadd [#allocation6], %s26
      %s28 = sshll.u32 [#allocation5], 4
      %s29 = int_to_ptr.vmem [resolvable:$true] %s28
      %34 = dma.hbm_to_vmem [thread:$0]  %s1, 1024, %s29, [#allocation6], 128, 128, 8
    $region9: #{tpu_custom_call.1} parent=1 // pred_fallthru
      _
    // Predicated region
    $region10: #{tpu_custom_call.1} parent=1 // pred_check
      _
    $region11: #{tpu_custom_call.1} parent=1 // pred_check_branch
      %36 = sbr.rel (0) target = $region13
    $region12: #{tpu_custom_call.1} parent=1 // pred_region
      _
    $region13: #{tpu_custom_call.1} parent=1 // pred_fallthru
      _
    // Predicated region
    $region14: #{tpu_custom_call.1} parent=1 // pred_check
      _
    $region15: #{tpu_custom_call.1} parent=1 // pred_check_branch
      %38 = sbr.rel (0) target = $region17
    $region16: #{tpu_custom_call.1} parent=1 // pred_region
      %39 = dma.done [#allocation3], 512
    $region17: #{tpu_custom_call.1} parent=1 // pred_fallthru
      _
    // Predicated region
    $region18: #{tpu_custom_call.1} parent=1 // pred_check
      _
    $region19: #{tpu_custom_call.1} parent=1 // pred_check_branch
      %41 = sbr.rel (0) target = $region21
    $region20: #{tpu_custom_call.1} parent=1 // pred_region
      %42 = dma.done [#allocation6], 1024
    $region21: #{tpu_custom_call.1} parent=1 // pred_fallthru
      _
    %v43 = vld [vmem:[#allocation2] sm:$0xff]
    %v44 = vld [vmem:[#allocation2 + $0x8] sm:$0xff]
    %v45 = vld [vmem:[#allocation2 + $0x10] sm:$0xff]
    %v46 = vld [vmem:[#allocation2 + $0x18] sm:$0xff]
    %v47 = vld [vmem:[#allocation5] sm:$0xff]
    %v48 = vld [vmem:[#allocation5 + $0x8] sm:$0xff]
    %v49 = vld [vmem:[#allocation5 + $0x10] sm:$0xff]
    %v50 = vld [vmem:[#allocation5 + $0x18] sm:$0xff]
    %v51 = vld [vmem:[#allocation5 + $0x20] sm:$0xff]
    %v52 = vld [vmem:[#allocation5 + $0x28] sm:$0xff]
    %v53 = vld [vmem:[#allocation5 + $0x30] sm:$0xff]
    %v54 = vld [vmem:[#allocation5 + $0x38] sm:$0xff]
    %v55 = vld [vmem:[%s2] sm:$0x1]
    %v57 = vlaneseq
    %v58 = vshrl.u32 %v57, 7
    %v59 = vsub.s32 0, %v58
    %v60 = vrot.slane %v55, %v59
    %vm62 = vcmask 523264
    %v64 = vsel %vm62, %v43, 0
    %v67 = vsel %vm62, %v44, 0
    %v70 = vsel %vm62, %v45, 0
    %v73 = vsel %vm62, %v46, 0
    %75 = vmatprep.subr.mxu0 0.0
    %76 = vmatpush1.msra.mxu0 %v47
    %77 = vmatprep.subr.mxu0 0.0
    %78 = vmatpush1.msra.mxu0 %v48
    %79 = vmatprep.subr.mxu0 0.0
    %80 = vmatpush1.msra.mxu0 %v49
    %81 = vmatprep.subr.mxu0 0.0
    %82 = vmatpush1.msra.mxu0 %v50
    %83 = vmatprep.subr.mxu0 0.0
    %84 = vmatpush1.msra.mxu0 %v51
    %85 = vmatprep.subr.mxu0 0.0
    %86 = vmatpush1.msra.mxu0 %v52
    %87 = vmatprep.subr.mxu0 0.0
    %88 = vmatpush1.msra.mxu0 %v53
    %89 = vmatprep.subr.mxu0 0.0
    %90 = vmatpush1.msra.mxu0 %v54
    %91 = vmatprep.subr.mxu0 0.0
    %92 = vmatpush1.msra.mxu0 0.0
    %93 = vmatprep.subr.mxu0 0.0
    %94 = vmatpush1.msra.mxu0 0.0
    %95 = vmatprep.subr.mxu0 0.0
    %96 = vmatpush1.msra.mxu0 0.0
    %97 = vmatprep.subr.mxu0 0.0
    %98 = vmatpush1.msra.mxu0 0.0
    %99 = vmatprep.subr.mxu0 0.0
    %100 = vmatpush1.msra.mxu0 0.0
    %101 = vmatprep.subr.mxu0 0.0
    %102 = vmatpush1.msra.mxu0 0.0
    %103 = vmatprep.subr.mxu0 0.0
    %104 = vmatpush1.msra.mxu0 0.0
    %105 = vmatprep.subr.mxu0 0.0
    %106 = vmatpush1.msra.mxu0 0.0
    %107 = vmatprep.subr.mxu0 0.0
    %108 = vmatpush1.msra.mxu0 0.0
    %109 = vmatprep.subr.mxu0 0.0
    %110 = vmatpush1.msra.mxu0 0.0
    %111 = vmatprep.subr.mxu0 0.0
    %112 = vmatpush1.msra.mxu0 0.0
    %113 = vmatprep.subr.mxu0 0.0
    %114 = vmatpush1.msra.mxu0 0.0
    %115 = vmatprep.subr.mxu0 0.0
    %116 = vmatpush1.msra.mxu0 0.0
    %117 = vmatprep.subr.mxu0 0.0
    %118 = vmatpush1.msra.mxu0 0.0
    %119 = vmatprep.subr.mxu0 0.0
    %120 = vmatpush1.msra.mxu0 0.0
    %121 = vmatprep.subr.mxu0 0.0
    %122 = vmatpush1.msra.mxu0 0.0
    %123 = vmatprep.subr.mxu0 0.0
    %124 = vmatpush1.msra.mxu0 0.0
    %125 = vmatprep.subr.mxu0 0.0
    %126 = vmatpush1.msra.mxu0 0.0
    %127 = vmatprep.subr.mxu0 0.0
    %128 = vmatpush1.msra.mxu0 0.0
    %129 = vmatprep.subr.mxu0 0.0
    %130 = vmatpush1.msra.mxu0 0.0
    %131 = vmatprep.subr.mxu0 0.0
    %132 = vmatpush1.msra.mxu0 0.0
    %133 = vmatprep.subr.mxu0 0.0
    %134 = vmatpush1.msra.mxu0 0.0
    %135 = vmatprep.subr.mxu0 0.0
    %136 = vmatpush1.msra.mxu0 0.0
    %137 = vmatprep.subr.mxu0 0.0
    %138 = vmatpush1.msra.mxu0 0.0
    %139 = vmatprep.mubr.f32.mxu0 0.0
    %140 = vmatmul.mubr.f32.gmra.mrb[0].mxu0 %v64
    %v141 = vpop.f32.mrb[0].mxu0
    %v142 = vadd.f32 %v60, %v141
    %v143 = vpop.f32.mrb[0].mxu0
    %144 = vmatprep.mubr.f32.mxu0 0.0
    %145 = vmatmul.mubr.f32.gmra.mrb[0].mxu0 %v67
    %v146 = vpop.f32.mrb[0].mxu0
    %v147 = vadd.f32 %v60, %v146
    %v148 = vpop.f32.mrb[0].mxu0
    %149 = vmatprep.mubr.f32.mxu0 0.0
    %150 = vmatmul.mubr.f32.gmra.mrb[0].mxu0 %v70
    %v151 = vpop.f32.mrb[0].mxu0
    %v152 = vadd.f32 %v60, %v151
    %v153 = vpop.f32.mrb[0].mxu0
    %154 = vmatprep.mubr.f32.mxu0 0.0
    %155 = vmatmul.mubr.f32.gmra.mrb[0].mxu0 %v73
    %v156 = vpop.f32.mrb[0].mxu0
    %v157 = vadd.f32 %v60, %v156
    %v158 = vpop.f32.mrb[0].mxu0
    %159 = vdwg.mxu0
    %160 = vst [vmem:[#allocation7] sm:$0xff] %v142
    %161 = vst [vmem:[#allocation7 + $0x8] sm:$0xff] %v147
    %162 = vst [vmem:[#allocation7 + $0x10] sm:$0xff] %v152
    %163 = vst [vmem:[#allocation7 + $0x18] sm:$0xff] %v157
    // Predicated region
    $region22: #{tpu_custom_call.1} parent=1 // pred_check
      _
    $region23: #{tpu_custom_call.1} parent=1 // pred_check_branch
      %165 = sbr.rel (0) target = $region25
    $region24: #{tpu_custom_call.1} parent=1 // pred_region
      %s167 = ssub.s32 512, 512
      %168 = vsyncadd [#allocation4], %s167
      %s169 = sshll.u32 [#allocation7], 4
      %s170 = int_to_ptr.vmem [resolvable:$true] %s169
      %175 = dma.vmem_to_hbm [thread:$0]  %s170, 512, %s3, [#allocation4], 128, 128, 8
    $region25: #{tpu_custom_call.1} parent=1 // pred_fallthru
      _
    // Predicated region
    $region26: #{tpu_custom_call.1} parent=1 // pred_check
      _
    $region27: #{tpu_custom_call.1} parent=1 // pred_check_branch
      %177 = sbr.rel (0) target = $region29
    $region28: #{tpu_custom_call.1} parent=1 // pred_region
      %178 = dma.done [#allocation4], 512
    $region29: #{tpu_custom_call.1} parent=1 // pred_fallthru
      _
    %179 = vsyncpa [#allocation3], 1
    %180 = vsyncpa [#allocation6], 1
    %181 = vsyncpa [#allocation4], 1

</llo_original>
